<compile_context>
chip_gen: v5e
topology: v5e:2x2
jax: 0.10.0
libtpu: 0.0.40
codegen_flags: <defaults>
</compile_context>

<pallas_src>
import jax
import jax.numpy as jnp
from jax.experimental import pallas as pl
from jax.experimental.pallas import tpu as pltpu


def _round_up(n, m):
    return ((n + m - 1) // m) * m


def policy_net_kernel(x_ref, w1_ref, b1_ref, w2t_ref, b2_ref, o_ref):
    x = x_ref[...]          # (tb, 4)   lane-sparse input, read column-wise below
    w1 = w1_ref[...]        # (4, 128)

    # Layer 1: unrolled VPU broadcast-FMA over K=4 (keeps the MXU off the path).
    h = x[:, 0:1] * w1[0:1, :]                       # (tb, 128)
    for k in range(1, x.shape[1]):                   # static unroll, 3 more FMAs
        h = h + x[:, k:k + 1] * w1[k:k + 1, :]
    h = jnp.maximum(h + b1_ref[...], 0.0)            # bias + ReLU, (tb, 128)

    # Layer 2: only 2 output columns, so do per-column VPU multiply + XLU
    # lane-reduce instead of a padded MXU matmul; store the compact (tb, 2).
    w2t = w2t_ref[...]                               # (2, 128)
    b2 = b2_ref[...]                                 # (1, 2)
    for o in range(w2t.shape[0]):                    # static unroll over 2 cols
        y_o = jnp.sum(h * w2t[o:o + 1, :], axis=-1, keepdims=True)  # (tb, 1)
        o_ref[:, o:o + 1] = jax.nn.sigmoid(y_o + b2[:, o:o + 1])


def policy_network_forward(x, w1, b1, w2, b2, *, block_b=8192):
    """x: (B, 4) f32; w1: (4, 128); b1: (1, 128); w2: (128, 2); b2: (1, 2).

    Weights are stored as (in, out) — transposed vs PyTorch's (out, in); any
    checkpoint-loading path must transpose accordingly.
    Returns (B, 2) f32 probabilities.
    """
    B, F = x.shape
    H = w1.shape[1]
    out_dim = w2.shape[1]

    # Batch tile: sublane-aligned (8), capped so (a) large batches stay within
    # VMEM and (b) there are >=2 grid steps when B allows it, so the "parallel"
    # batch axis shards across both v7x TensorCores.
    B8 = _round_up(B, 8)
    tb = min(block_b, B8)
    if B8 >= 16:
        tb = min(tb, _round_up((B8 + 1) // 2, 8))
    tb = max(tb, 8)
    grid_b = pl.cdiv(B, tb)        # ragged last tile handled by Pallas masking

    # Pass w2 transposed: its 2 rows broadcast cheaply across the sublane axis.
    w2t = w2.T                      # (2, 128) — tiny, negligible wrapper cost

    out = pl.pallas_call(
        policy_net_kernel,
        out_shape=jax.ShapeDtypeStruct((B, out_dim), jnp.float32),
        grid_spec=pltpu.PrefetchScalarGridSpec(
            num_scalar_prefetch=0,
            grid=(grid_b,),
            in_specs=[
                pl.BlockSpec((tb, F), lambda i: (i, 0)),        # x tile
                pl.BlockSpec((F, H), lambda i: (0, 0)),         # w1 (resident)
                pl.BlockSpec((1, H), lambda i: (0, 0)),         # b1
                pl.BlockSpec((out_dim, H), lambda i: (0, 0)),   # w2^T
                pl.BlockSpec((1, out_dim), lambda i: (0, 0)),   # b2
            ],
            out_specs=pl.BlockSpec((tb, out_dim), lambda i: (i, 0)),  # compact
        ),
        compiler_params=pltpu.CompilerParams(
            dimension_semantics=("parallel",),        # shard B-tiles on v7x TCs
            vmem_limit_bytes=48 * 1024 * 1024,        # lane-padded bufs @ tb=8K
        ),
        cost_estimate=pl.CostEstimate(
            flops=2 * B * H * (F + out_dim),
            transcendentals=B * out_dim,
            bytes_accessed=4 * B * (F + out_dim) + 4 * (F * H + H + H * out_dim + out_dim),
        ),
    )(x, w1, b1, w2t, b2)

    return out


def init_params(key):
    """Deterministic init mimicking nn.Linear's U(-1/sqrt(fan_in), 1/sqrt(fan_in))."""
    k1, k2, k3, k4 = jax.random.split(key, 4)
    in1, out1 = 4, 128
    in2, out2 = 128, 2
    bound1 = 1.0 / jnp.sqrt(jnp.float32(in1))
    bound2 = 1.0 / jnp.sqrt(jnp.float32(in2))
    # Stored as (in, out) — transposed relative to PyTorch's (out, in) weight.
    w1 = jax.random.uniform(k1, (in1, out1), jnp.float32, -bound1, bound1)
    b1 = jax.random.uniform(k2, (1, out1), jnp.float32, -bound1, bound1)
    w2 = jax.random.uniform(k3, (in2, out2), jnp.float32, -bound2, bound2)
    b2 = jax.random.uniform(k4, (1, out2), jnp.float32, -bound2, bound2)
    return w1, b1, w2, b2


def _reference(x, w1, b1, w2, b2):
    return jax.nn.sigmoid(jnp.maximum(x @ w1 + b1, 0.0) @ w2 + b2)


if __name__ == "__main__":
    key = jax.random.PRNGKey(0)
    kx, kx2, kp = jax.random.split(key, 3)

    w1, b1, w2, b2 = init_params(kp)

    # Small batch (single tile), matches CartPole-style usage: (B, 4) -> (B, 2).
    batch = 8
    x = jax.random.normal(kx, (batch, 4), dtype=jnp.float32)
    out = jax.block_until_ready(policy_network_forward(x, w1, b1, w2, b2))
    assert out.shape == (batch, 2)
    assert jnp.allclose(out, _reference(x, w1, b1, w2, b2), atol=1e-5, rtol=1e-5)

    # Multi-tile + ragged last tile path (grid of 2, non-dividing block).
    batch2 = 100
    x2 = jax.random.normal(kx2, (batch2, 4), dtype=jnp.float32)
    out2 = jax.block_until_ready(policy_network_forward(x2, w1, b1, w2, b2))
    assert out2.shape == (batch2, 2)
    assert jnp.allclose(out2, _reference(x2, w1, b1, w2, b2), atol=1e-5, rtol=1e-5)

    print("KERNEL_OK")
</pallas_src>

<mosaic_0001>
module attributes {stable_mosaic.version = 11 : i64} {
  func.func @policy_net_kernel(%arg0: i32, %arg1: memref<8x4xf32, #tpu.memory_space<vmem>>, %arg2: memref<4x128xf32, #tpu.memory_space<vmem>>, %arg3: memref<1x128xf32, #tpu.memory_space<vmem>>, %arg4: memref<2x128xf32, #tpu.memory_space<vmem>>, %arg5: memref<1x2xf32, #tpu.memory_space<vmem>>, %arg6: memref<8x2xf32, #tpu.memory_space<vmem>>) attributes {dimension_semantics = [#tpu.dimension_semantics<parallel>], iteration_bounds = array<i64: 1>, scalar_prefetch = 0 : i64, scratch_operands = 0 : i64, tpu.core_type = #tpu.core_type<tc>, window_params = [{transform_indices = @transform_0, window_bounds = array<i64: 8, 4>}, {pipeline_mode = #tpu.pipeline_mode<synchronous>, transform_indices = @transform_1, window_bounds = array<i64: 4, 128>}, {pipeline_mode = #tpu.pipeline_mode<synchronous>, transform_indices = @transform_2, window_bounds = array<i64: 1, 128>}, {pipeline_mode = #tpu.pipeline_mode<synchronous>, transform_indices = @transform_3, window_bounds = array<i64: 2, 128>}, {pipeline_mode = #tpu.pipeline_mode<synchronous>, transform_indices = @transform_4, window_bounds = array<i64: 1, 2>}, {transform_indices = @transform_5, window_bounds = array<i64: 8, 2>}]} {
    %c0 = arith.constant 0 : index
    %c0_0 = arith.constant 0 : index
    %0 = vector.load %arg1[%c0, %c0_0] : memref<8x4xf32, #tpu.memory_space<vmem>>, vector<8x4xf32>
    %c0_1 = arith.constant 0 : index
    %c0_2 = arith.constant 0 : index
    %1 = vector.load %arg2[%c0_1, %c0_2] : memref<4x128xf32, #tpu.memory_space<vmem>>, vector<4x128xf32>
    %2 = vector.extract_strided_slice %0 {offsets = [0, 0], sizes = [8, 1], strides = [1, 1]} : vector<8x4xf32> to vector<8x1xf32>
    %3 = vector.extract_strided_slice %1 {offsets = [0, 0], sizes = [1, 128], strides = [1, 1]} : vector<4x128xf32> to vector<1x128xf32>
    %4 = vector.broadcast %2 : vector<8x1xf32> to vector<8x128xf32>
    %5 = vector.broadcast %3 : vector<1x128xf32> to vector<8x128xf32>
    %6 = arith.mulf %4, %5 : vector<8x128xf32>
    %7 = vector.extract_strided_slice %0 {offsets = [0, 1], sizes = [8, 1], strides = [1, 1]} : vector<8x4xf32> to vector<8x1xf32>
    %8 = vector.extract_strided_slice %1 {offsets = [1, 0], sizes = [1, 128], strides = [1, 1]} : vector<4x128xf32> to vector<1x128xf32>
    %9 = vector.broadcast %7 : vector<8x1xf32> to vector<8x128xf32>
    %10 = vector.broadcast %8 : vector<1x128xf32> to vector<8x128xf32>
    %11 = arith.mulf %9, %10 : vector<8x128xf32>
    %12 = arith.addf %6, %11 : vector<8x128xf32>
    %13 = vector.extract_strided_slice %0 {offsets = [0, 2], sizes = [8, 1], strides = [1, 1]} : vector<8x4xf32> to vector<8x1xf32>
    %14 = vector.extract_strided_slice %1 {offsets = [2, 0], sizes = [1, 128], strides = [1, 1]} : vector<4x128xf32> to vector<1x128xf32>
    %15 = vector.broadcast %13 : vector<8x1xf32> to vector<8x128xf32>
    %16 = vector.broadcast %14 : vector<1x128xf32> to vector<8x128xf32>
    %17 = arith.mulf %15, %16 : vector<8x128xf32>
    %18 = arith.addf %12, %17 : vector<8x128xf32>
    %19 = vector.extract_strided_slice %0 {offsets = [0, 3], sizes = [8, 1], strides = [1, 1]} : vector<8x4xf32> to vector<8x1xf32>
    %20 = vector.extract_strided_slice %1 {offsets = [3, 0], sizes = [1, 128], strides = [1, 1]} : vector<4x128xf32> to vector<1x128xf32>
    %21 = vector.broadcast %19 : vector<8x1xf32> to vector<8x128xf32>
    %22 = vector.broadcast %20 : vector<1x128xf32> to vector<8x128xf32>
    %23 = arith.mulf %21, %22 : vector<8x128xf32>
    %24 = arith.addf %18, %23 : vector<8x128xf32>
    %c0_3 = arith.constant 0 : index
    %c0_4 = arith.constant 0 : index
    %25 = vector.load %arg3[%c0_3, %c0_4] : memref<1x128xf32, #tpu.memory_space<vmem>>, vector<1x128xf32>
    %26 = vector.broadcast %25 : vector<1x128xf32> to vector<8x128xf32>
    %27 = arith.addf %24, %26 : vector<8x128xf32>
    %cst = arith.constant 0.000000e+00 : f32
    %28 = vector.broadcast %cst : f32 to vector<8x128xf32>
    %29 = arith.maximumf %27, %28 : vector<8x128xf32>
    %c0_5 = arith.constant 0 : index
    %c0_6 = arith.constant 0 : index
    %30 = vector.load %arg4[%c0_5, %c0_6] : memref<2x128xf32, #tpu.memory_space<vmem>>, vector<2x128xf32>
    %c0_7 = arith.constant 0 : index
    %c0_8 = arith.constant 0 : index
    %31 = vector.load %arg5[%c0_7, %c0_8] : memref<1x2xf32, #tpu.memory_space<vmem>>, vector<1x2xf32>
    %32 = vector.extract_strided_slice %30 {offsets = [0, 0], sizes = [1, 128], strides = [1, 1]} : vector<2x128xf32> to vector<1x128xf32>
    %33 = vector.broadcast %32 : vector<1x128xf32> to vector<8x128xf32>
    %34 = arith.mulf %29, %33 : vector<8x128xf32>
    %cst_9 = arith.constant dense<0.000000e+00> : vector<8xf32>
    %35 = vector.multi_reduction <add>, %34, %cst_9 [1] : vector<8x128xf32> to vector<8xf32>
    %36 = vector.shape_cast %35 : vector<8xf32> to vector<8x1xf32>
    %37 = vector.extract_strided_slice %31 {offsets = [0, 0], sizes = [1, 1], strides = [1, 1]} : vector<1x2xf32> to vector<1x1xf32>
    %38 = vector.broadcast %37 : vector<1x1xf32> to vector<8x1xf32>
    %39 = arith.addf %36, %38 : vector<8x1xf32>
    %40 = arith.negf %39 : vector<8x1xf32>
    %41 = math.exp %40 : vector<8x1xf32>
    %cst_10 = arith.constant 1.000000e+00 : f32
    %42 = vector.broadcast %cst_10 : f32 to vector<8x1xf32>
    %43 = arith.addf %42, %41 : vector<8x1xf32>
    %44 = arith.divf %42, %43 : vector<8x1xf32>
    %c0_11 = arith.constant 0 : index
    %c0_12 = arith.constant 0 : index
    %45 = vector.load %arg6[%c0_11, %c0_12] : memref<8x2xf32, #tpu.memory_space<vmem>>, vector<8x1xf32>
    tpu.vector_store %arg6[%c0_11, %c0_12], %44 {strides = array<i32>} : memref<8x2xf32, #tpu.memory_space<vmem>>, vector<8x1xf32>,
    %46 = vector.extract_strided_slice %30 {offsets = [1, 0], sizes = [1, 128], strides = [1, 1]} : vector<2x128xf32> to vector<1x128xf32>
    %47 = vector.broadcast %46 : vector<1x128xf32> to vector<8x128xf32>
    %48 = arith.mulf %29, %47 : vector<8x128xf32>
    %cst_13 = arith.constant dense<0.000000e+00> : vector<8xf32>
    %49 = vector.multi_reduction <add>, %48, %cst_13 [1] : vector<8x128xf32> to vector<8xf32>
    %50 = vector.shape_cast %49 : vector<8xf32> to vector<8x1xf32>
    %51 = vector.extract_strided_slice %31 {offsets = [0, 1], sizes = [1, 1], strides = [1, 1]} : vector<1x2xf32> to vector<1x1xf32>
    %52 = vector.broadcast %51 : vector<1x1xf32> to vector<8x1xf32>
    %53 = arith.addf %50, %52 : vector<8x1xf32>
    %54 = arith.negf %53 : vector<8x1xf32>
    %55 = math.exp %54 : vector<8x1xf32>
    %cst_14 = arith.constant 1.000000e+00 : f32
    %56 = vector.broadcast %cst_14 : f32 to vector<8x1xf32>
    %57 = arith.addf %56, %55 : vector<8x1xf32>
    %58 = arith.divf %56, %57 : vector<8x1xf32>
    %c0_15 = arith.constant 0 : index
    %c1 = arith.constant 1 : index
    %59 = vector.load %arg6[%c0_15, %c1] : memref<8x2xf32, #tpu.memory_space<vmem>>, vector<8x1xf32>
    tpu.vector_store %arg6[%c0_15, %c1], %58 {strides = array<i32>} : memref<8x2xf32, #tpu.memory_space<vmem>>, vector<8x1xf32>,
    return
  }
  func.func @transform_0(%arg0: i32) -> (i32, i32) {
    %c0_i32 = arith.constant 0 : i32
    %c0_i32_0 = arith.constant 0 : i32
    return %arg0, %c0_i32 : i32, i32
  }
  func.func @transform_1(%arg0: i32) -> (i32, i32) {
    %c0_i32 = arith.constant 0 : i32
    %c0_i32_0 = arith.constant 0 : i32
    %c0_i32_1 = arith.constant 0 : i32
    return %c0_i32, %c0_i32_0 : i32, i32
  }
  func.func @transform_2(%arg0: i32) -> (i32, i32) {
    %c0_i32 = arith.constant 0 : i32
    %c0_i32_0 = arith.constant 0 : i32
    %c0_i32_1 = arith.constant 0 : i32
    return %c0_i32, %c0_i32_0 : i32, i32
  }
  func.func @transform_3(%arg0: i32) -> (i32, i32) {
    %c0_i32 = arith.constant 0 : i32
    %c0_i32_0 = arith.constant 0 : i32
    %c0_i32_1 = arith.constant 0 : i32
    return %c0_i32, %c0_i32_0 : i32, i32
  }
  func.func @transform_4(%arg0: i32) -> (i32, i32) {
    %c0_i32 = arith.constant 0 : i32
    %c0_i32_0 = arith.constant 0 : i32
    %c0_i32_1 = arith.constant 0 : i32
    return %c0_i32, %c0_i32_0 : i32, i32
  }
  func.func @transform_5(%arg0: i32) -> (i32, i32) {
    %c0_i32 = arith.constant 0 : i32
    %c0_i32_0 = arith.constant 0 : i32
    return %arg0, %c0_i32 : i32, i32
  }
}

</mosaic_0001>

<llo_original>
// kernel: tpu_custom_call.1
$region0: #{tpu_custom_call.1}
  #allocation0 [shape = 'u32[]', space=smem, size = 0x4, offset = 0x4, fixed_abs, tag = 'smem constant byte address 0x4 - core index']
  #allocation1 [shape = 'u32[72,128]{1,0:T(1,128)}', space=vmem, size = 0x9000, scoped, tag = 'internal scratch']
  %s0 = inlined_call_operand.vmem [shape: f32[8,4], index: 0, kind: input, shape index: {}]
  %s1 = inlined_call_operand.vmem [shape: f32[4,128], index: 1, kind: input, shape index: {}]
  %s2 = inlined_call_operand.vmem [shape: f32[1,128], index: 2, kind: input, shape index: {}]
  %s3 = inlined_call_operand.vmem [shape: f32[2,128], index: 3, kind: input, shape index: {}]
  %s4 = inlined_call_operand.vmem [shape: f32[1,2], index: 4, kind: input, shape index: {}]
  %s5 = inlined_call_operand.vmem [shape: f32[8,2], index: 5, kind: output, shape index: {}]
  %s6 = sld [smem:[#allocation0]]
  $region30: #{tpu_custom_call.1} parent=0
    _
  %s8 = ssub.s32 1, %s6
  %s9 = scalar_select 0, %s8, %s6
  // Predicated region
  $region2: #{tpu_custom_call.1} parent=0 // pred_check
    _
  $region3: #{tpu_custom_call.1} parent=0 // pred_check_branch
    %11 = sbr.rel (0) target = $region5
  $region4: #{tpu_custom_call.1} parent=0 // pred_region
    _
  $region5: #{tpu_custom_call.1} parent=0 // pred_fallthru
    _
  // Predicated region
  $region6: #{tpu_custom_call.1} parent=0 // pred_check
    _
  $region7: #{tpu_custom_call.1} parent=0 // pred_check_branch
    %13 = sbr.rel (0) target = $region9
  $region8: #{tpu_custom_call.1} parent=0 // pred_region
    _
  $region9: #{tpu_custom_call.1} parent=0 // pred_fallthru
    _
  // Predicated region
  $region10: #{tpu_custom_call.1} parent=0 // pred_check
    _
  $region11: #{tpu_custom_call.1} parent=0 // pred_check_branch
    %15 = sbr.rel (0) target = $region13
  $region12: #{tpu_custom_call.1} parent=0 // pred_region
    _
  $region13: #{tpu_custom_call.1} parent=0 // pred_fallthru
    _
  // Predicated region
  $region14: #{tpu_custom_call.1} parent=0 // pred_check
    _
  $region15: #{tpu_custom_call.1} parent=0 // pred_check_branch
    %17 = sbr.rel (0) target = $region17
  $region16: #{tpu_custom_call.1} parent=0 // pred_region
    _
  $region17: #{tpu_custom_call.1} parent=0 // pred_fallthru
    _
  // Predicated region
  $region18: #{tpu_custom_call.1} parent=0 // pred_check
    _
  $region19: #{tpu_custom_call.1} parent=0 // pred_check_branch
    %19 = sbr.rel (0) target = $region21
  $region20: #{tpu_custom_call.1} parent=0 // pred_region
    _
  $region21: #{tpu_custom_call.1} parent=0 // pred_fallthru
    _
  %v20 = vld [vmem:[%s0] sm:$0xff]
  %v21 = vld [vmem:[%s1] sm:$0xf]
  %23 = vset.pattern.permute.xlu0 0
  %24 = vperm.xlu0 %23, %v20
  %v25 = vpop.permute.xlu0 %24
  %v27 = vperm.slane %v21, 0
  %v28 = vmul.f32 %v25, %v27
  %29 = vset.pattern.permute.xlu0 1
  %30 = vperm.xlu0 %29, %v20
  %v31 = vpop.permute.xlu0 %30
  %v33 = vperm.slane %v21, 1
  %v34 = vmul.f32 %v31, %v33
  %v35 = vadd.f32 %v28, %v34
  %36 = vset.pattern.permute.xlu0 2
  %37 = vperm.xlu0 %36, %v20
  %v38 = vpop.permute.xlu0 %37
  %v40 = vperm.slane %v21, 2
  %v41 = vmul.f32 %v38, %v40
  %v42 = vadd.f32 %v35, %v41
  %43 = vset.pattern.permute.xlu0 3
  %44 = vperm.xlu0 %43, %v20
  %v45 = vpop.permute.xlu0 %44
  %v47 = vperm.slane %v21, 3
  %v48 = vmul.f32 %v45, %v47
  %v49 = vadd.f32 %v42, %v48
  %v50 = vld [vmem:[%s2] sm:$0x1]
  %v52 = vperm.slane %v50, 0
  %v54 = vadd.f32 %v49, %v52
  %v55 = vmax.f32 %v54, 0.0
  %v56 = vld [vmem:[%s3] sm:$0x3]
  %v57 = vld [vmem:[%s4] sm:$0x1]
  %v58 = vperm.slane %v56, 0
  %v59 = vmul.f32 %v55, %v58
  %60 = vadd.xlane.f32.xlu0 %v59
  %v61 = vpop.xlane.xlu0 %60
  %v63 = vperm.slane %v57, 0
  %v65 = vadd.f32 %v61, %v63
  %v66 = vxor.u32 %v65, 2147483648
  %v67 = vmul.f32 %v66, 1.442695
  %v68 = vpow.pop %v67
  %v69 = vadd.f32 %v68, 1.0
  %v70 = vrcp.pop %v69
  %v71 = vmul.f32 %v69, %v70
  %v72 = vsub.f32 1.0, %v71
  %v73 = vmul.f32 %v70, %v72
  %v74 = vadd.f32 %v70, %v73
  %vm75 = vweird.f32 %v69
  %vm76 = vweird.f32 %v70
  %vm77 = vmor %vm75, %vm76
  %v78 = vsel %vm77, %v70, %v74
  %v79 = vand.u32 2147483647, %v69
  %vm80 = vcmp.eq.f32.partialorder %v79, 8.507059e+37
  %v81 = vand.u32 %v69, 2147483648
  %v82 = vor.u32 1.1754944e-38, %v81
  %v83 = vsel %vm80, %v82, %v78
  %v84 = vmul.f32 1.0, %v83
  %vm85 = vcmask 7168
  %86 = vst.msk [vmem:[%s5] sm:$0xff] %vm85, %v84
  %v87 = vperm.slane %v56, 1
  %v88 = vmul.f32 %v55, %v87
  %89 = vadd.xlane.f32.xlu0 %v88
  %v90 = vpop.xlane.xlu0 %89
  %v91 = vadd.f32 %v90, %v63
  %v92 = vxor.u32 %v91, 2147483648
  %v93 = vmul.f32 %v92, 1.442695
  %v94 = vpow.pop %v93
  %v95 = vadd.f32 %v94, 1.0
  %v96 = vrcp.pop %v95
  %v97 = vmul.f32 %v95, %v96
  %v98 = vsub.f32 1.0, %v97
  %v99 = vmul.f32 %v96, %v98
  %v100 = vadd.f32 %v96, %v99
  %vm101 = vweird.f32 %v95
  %vm102 = vweird.f32 %v96
  %vm103 = vmor %vm101, %vm102
  %v104 = vsel %vm103, %v96, %v100
  %v105 = vand.u32 2147483647, %v95
  %vm106 = vcmp.eq.f32.partialorder %v105, 8.507059e+37
  %v107 = vand.u32 %v95, 2147483648
  %v108 = vor.u32 1.1754944e-38, %v107
  %v109 = vsel %vm106, %v108, %v104
  %v110 = vmul.f32 1.0, %v109
  %vm111 = vcmask 15368
  %112 = vst.msk [vmem:[%s5] sm:$0xff] %vm111, %v110
  // Predicated region
  $region22: #{tpu_custom_call.1} parent=0 // pred_check
    _
  $region23: #{tpu_custom_call.1} parent=0 // pred_check_branch
    %114 = sbr.rel (0) target = $region25
  $region24: #{tpu_custom_call.1} parent=0 // pred_region
    _
  $region25: #{tpu_custom_call.1} parent=0 // pred_fallthru
    _
  // Predicated region
  $region26: #{tpu_custom_call.1} parent=0 // pred_check
    _
  $region27: #{tpu_custom_call.1} parent=0 // pred_check_branch
    %116 = sbr.rel (0) target = $region29
  $region28: #{tpu_custom_call.1} parent=0 // pred_region
    _
  $region29: #{tpu_custom_call.1} parent=0 // pred_fallthru
    _

</llo_original>
